<compile_context>
chip_gen: v5e
topology: v5e:2x2
jax: 0.10.0
libtpu: 0.0.40
codegen_flags: <defaults>
</compile_context>

<pallas_src>
import numpy as np
import jax
import jax.numpy as jnp
from jax import lax
from jax.experimental import pallas as pl
from jax.experimental.pallas import tpu as pltpu

_BN_EPS = 1e-5


# ------------------------------ in-kernel helpers ------------------------------

def _log_softmax(z):
    m = jnp.max(z, axis=-1, keepdims=True)
    return z - (m + jnp.log(jnp.sum(jnp.exp(z - m), axis=-1, keepdims=True)))


def _layer_norm(z, g, b, eps=1e-5):
    mu = jnp.mean(z, axis=-1, keepdims=True)
    var = jnp.mean((z - mu) ** 2, axis=-1, keepdims=True)
    return (z - mu) * lax.rsqrt(var + eps) * g + b


# ------------------------------ Pallas kernels ------------------------------

def _stage_kernel(x_ref, wms_ref, bms_ref, wf_ref, bf_ref, o_ref):
    """One full multi-scale stage for one batch item.

    x_ref:  (1, Tp2, 2*Cin)  padded input, even/odd frame pairs folded into lanes
    wms_ref:(10*Cin, 8*H)    im2col multi-scale weights (4 branches x even/odd), bf16
    bms_ref:(1, 8*H)         fused conv1d+BN bias (tiled for even/odd), f32
    wf_ref: (8*H, H)         im2col conv2d(4,2)/stride2 weights (BN folded), bf16
    bf_ref: (1, H)           fused conv2d+BN bias, f32
    o_ref:  (1, To, H)       stage output, f32
    """
    To = o_ref.shape[1]
    Cin = x_ref.shape[2] // 2
    xv = x_ref[0]                                            # (Tp2, 2*Cin) f32
    # im2col over 10 taps (taps 0..8 feed the even output, 1..9 the odd output).
    pieces = []
    for j in range(10):
        a, par = j // 2, j % 2
        pieces.append(xv[a:a + To, par * Cin:(par + 1) * Cin])
    xcol = jnp.concatenate(pieces, axis=-1).astype(jnp.bfloat16)     # (To, 10*Cin)
    # 4 branches x (even, odd) in one lane-dense 8H-wide slab, kept in VMEM.
    m = jnp.dot(xcol, wms_ref[...], preferred_element_type=jnp.float32)
    m = jnp.maximum(m + bms_ref[...], 0.0)                            # (To, 8H)
    # Conv2d((4,2), stride=2) + BN + ReLU as a single (To, 8H) x (8H, H) matmul.
    f = jnp.dot(m.astype(jnp.bfloat16), wf_ref[...],
                preferred_element_type=jnp.float32) + bf_ref[...]
    o_ref[0] = jnp.maximum(f, 0.0)


def _tlayer_kernel(x_ref, rpe_ref, wqkv_ref, bqkv_ref, wo_ref, bo_ref,
                   w1_ref, b1_ref, w2_ref, b2_ref, ln_ref, o_ref):
    """One post-norm transformer encoder layer for one batch item, fully fused."""
    H = x_ref.shape[2]
    heads = rpe_ref.shape[0]
    dh = H // heads
    scale = 1.0 / float(np.sqrt(dh))

    lnp = ln_ref[...]                                        # (4, H)
    x = x_ref[0]                                             # (T, H) f32
    qkv = jnp.dot(x.astype(jnp.bfloat16), wqkv_ref[...],
                  preferred_element_type=jnp.float32) + bqkv_ref[...]   # (T, 3H)
    q = qkv[:, 0 * H:1 * H]
    k = qkv[:, 1 * H:2 * H]
    v = qkv[:, 2 * H:3 * H]

    ctx_parts = []
    for h in range(heads):                                   # static unrolled heads
        sl = slice(h * dh, (h + 1) * dh)
        s = lax.dot_general(q[:, sl], k[:, sl], (((1,), (1,)), ((), ())),
                            preferred_element_type=jnp.float32) * scale
        s = s + rpe_ref[h]
        s = s - jnp.max(s, axis=-1, keepdims=True)
        p = jnp.exp(s)
        p = p / jnp.sum(p, axis=-1, keepdims=True)
        ctx_parts.append(jnp.dot(p, v[:, sl], preferred_element_type=jnp.float32))
    ctx = jnp.concatenate(ctx_parts, axis=-1)                # (T, H)

    attn_out = jnp.dot(ctx.astype(jnp.bfloat16), wo_ref[...],
                       preferred_element_type=jnp.float32) + bo_ref[...]
    y = _layer_norm(x + attn_out, lnp[0:1, :], lnp[1:2, :])
    h1 = jnp.maximum(jnp.dot(y.astype(jnp.bfloat16), w1_ref[...],
                             preferred_element_type=jnp.float32) + b1_ref[...], 0.0)
    ff = jnp.dot(h1.astype(jnp.bfloat16), w2_ref[...],
                 preferred_element_type=jnp.float32) + b2_ref[...]
    o_ref[0] = _layer_norm(y + ff, lnp[2:3, :], lnp[3:4, :])


def _cls_pair_kernel(a_ref, b_ref, wa_ref, wb_ref, bias_ref, o_ref):
    """Two classifiers with equal row counts fused into one lane-dense (N,2V) store."""
    V = wa_ref.shape[1]
    bias = bias_ref[...]
    la = jnp.dot(a_ref[...].astype(jnp.bfloat16), wa_ref[...],
                 preferred_element_type=jnp.float32) + bias[:, :V]
    lb = jnp.dot(b_ref[...].astype(jnp.bfloat16), wb_ref[...],
                 preferred_element_type=jnp.float32) + bias[:, V:]
    o_ref[...] = jnp.concatenate([_log_softmax(la), _log_softmax(lb)], axis=-1)


def _cls_kernel(x_ref, w_ref, b_ref, o_ref):
    logits = jnp.dot(x_ref[...].astype(jnp.bfloat16), w_ref[...],
                     preferred_element_type=jnp.float32) + b_ref[...]
    o_ref[...] = _log_softmax(logits)


# ------------------------------ kernel wrappers ------------------------------

def msconv_stage(x, sp):
    """x: (B, Tc, Cin) f32 channels-last.  Returns (B, Tc//2, H) f32."""
    B, Tc, Cin = x.shape
    H = sp["bf"].shape[1]
    To = Tc // 2                                # PyTorch drops an odd trailing frame
    pad_hi = 4 + (Tc % 2)                       # single shared pad for all 4 branches
    xp = jnp.pad(x, ((0, 0), (4, pad_hi), (0, 0)))
    Tp2 = (Tc + 4 + pad_hi) // 2
    x2 = xp.reshape(B, Tp2, 2 * Cin)            # free row-major reshape: (even,odd) pairs
    return pl.pallas_call(
        _stage_kernel,
        out_shape=jax.ShapeDtypeStruct((B, To, H), jnp.float32),
        grid=(B,),
        in_specs=[
            pl.BlockSpec((1, Tp2, 2 * Cin), lambda i: (i, 0, 0)),
            pl.BlockSpec(sp["wms"].shape, lambda i: (0, 0)),
            pl.BlockSpec(sp["bms"].shape, lambda i: (0, 0)),
            pl.BlockSpec(sp["wf"].shape, lambda i: (0, 0)),
            pl.BlockSpec(sp["bf"].shape, lambda i: (0, 0)),
        ],
        out_specs=pl.BlockSpec((1, To, H), lambda i: (i, 0, 0)),
        compiler_params=pltpu.CompilerParams(dimension_semantics=("parallel",)),
    )(x2, sp["wms"], sp["bms"], sp["wf"], sp["bf"])


def transformer_encoder(x, tparams, heads=8, rpe_k=8):
    # TODO(synk): NewMoudle.TransformerEncoder source was not provided; this is a
    # standard 2-layer post-norm MHSA encoder with clipped relative-position bias
    # (dropout=0 in the reference config, so it is omitted).
    B, T, H = x.shape
    rel = jnp.clip(jnp.arange(T)[None, :] - jnp.arange(T)[:, None], -rpe_k, rpe_k) + rpe_k
    for lp in tparams["layers"]:
        rpe_bias = lp["rpe"][:, rel]                          # (heads, T, T)
        x = pl.pallas_call(
            _tlayer_kernel,
            out_shape=jax.ShapeDtypeStruct((B, T, H), jnp.float32),
            grid=(B,),
            in_specs=[
                pl.BlockSpec((1, T, H), lambda i: (i, 0, 0)),
                pl.BlockSpec((heads, T, T), lambda i: (0, 0, 0)),
                pl.BlockSpec(lp["wqkv"].shape, lambda i: (0, 0)),
                pl.BlockSpec(lp["bqkv"].shape, lambda i: (0, 0)),
                pl.BlockSpec(lp["wo"].shape, lambda i: (0, 0)),
                pl.BlockSpec(lp["bo"].shape, lambda i: (0, 0)),
                pl.BlockSpec(lp["w1"].shape, lambda i: (0, 0)),
                pl.BlockSpec(lp["b1"].shape, lambda i: (0, 0)),
                pl.BlockSpec(lp["w2"].shape, lambda i: (0, 0)),
                pl.BlockSpec(lp["b2"].shape, lambda i: (0, 0)),
                pl.BlockSpec(lp["ln"].shape, lambda i: (0, 0)),
            ],
            out_specs=pl.BlockSpec((1, T, H), lambda i: (i, 0, 0)),
            compiler_params=pltpu.CompilerParams(dimension_semantics=("parallel",)),
        )(x, rpe_bias, lp["wqkv"], lp["bqkv"], lp["wo"], lp["bo"],
          lp["w1"], lp["b1"], lp["w2"], lp["b2"], lp["ln"])
    return x


def classify_pair(a_bth, b_bth, cls_a, cls_b):
    """cls_a on a, cls_b on b (same (B,T,H) shape). Returns two (T, B, V) arrays."""
    wa, ba = cls_a
    wb, bb = cls_b
    B, T, H = a_bth.shape
    V = wa.shape[1]
    af = jnp.transpose(a_bth, (1, 0, 2)).reshape(T * B, H)
    bf = jnp.transpose(b_bth, (1, 0, 2)).reshape(T * B, H)
    bias = jnp.concatenate([ba, bb], axis=0).reshape(1, 2 * V)
    out = pl.pallas_call(
        _cls_pair_kernel,
        out_shape=jax.ShapeDtypeStruct((T * B, 2 * V), jnp.float32),
        grid=(1,),
        in_specs=[
            pl.BlockSpec((T * B, H), lambda i: (0, 0)),
            pl.BlockSpec((T * B, H), lambda i: (0, 0)),
            pl.BlockSpec((H, V), lambda i: (0, 0)),
            pl.BlockSpec((H, V), lambda i: (0, 0)),
            pl.BlockSpec((1, 2 * V), lambda i: (0, 0)),
        ],
        out_specs=pl.BlockSpec((T * B, 2 * V), lambda i: (0, 0)),
    )(af, bf, wa, wb, bias)
    out = out.reshape(T, B, 2 * V)
    return out[:, :, :V], out[:, :, V:]


def classify(x_bth, cls):
    w, b = cls
    B, T, H = x_bth.shape
    V = w.shape[1]
    xf = jnp.transpose(x_bth, (1, 0, 2)).reshape(T * B, H)
    out = pl.pallas_call(
        _cls_kernel,
        out_shape=jax.ShapeDtypeStruct((T * B, V), jnp.float32),
        grid=(1,),
        in_specs=[
            pl.BlockSpec((T * B, H), lambda i: (0, 0)),
            pl.BlockSpec((H, V), lambda i: (0, 0)),
            pl.BlockSpec((1, V), lambda i: (0, 0)),
        ],
        out_specs=pl.BlockSpec((T * B, V), lambda i: (0, 0)),
    )(xf, w, b.reshape(1, V))
    return out.reshape(T, B, V)


# ------------------------------ parameter setup ------------------------------

def _uniform(key, shape, bound):
    return jax.random.uniform(key, shape, jnp.float32, -bound, bound)


def _fold_stage(branch_ws, branch_bs, branch_bns, conv2_w, conv2_b, bn2):
    """Fold 4x(Conv1d+BN1d) and Conv2d(4,2)+BN2d into the fused-stage layouts."""
    H = branch_ws[0].shape[0]
    Cin = branch_ws[0].shape[1]
    w_parts, b_parts = [], []
    for (w, b, bn, k) in zip(branch_ws, branch_bs, branch_bns, (3, 5, 7, 9)):
        gamma, beta, mean, var = bn
        s = gamma / jnp.sqrt(var + _BN_EPS)
        wt = jnp.transpose(w, (2, 1, 0)) * s[None, None, :]      # (k, Cin, H)
        p = k // 2
        wt = jnp.pad(wt, ((4 - p, 4 - p), (0, 0), (0, 0)))       # embed into 9 shared taps
        w_parts.append(wt)
        b_parts.append((b - mean) * s + beta)
    wfull = jnp.concatenate(w_parts, axis=-1)                    # (9, Cin, 4H)
    wflat = wfull.reshape(9 * Cin, 4 * H)
    w_even = jnp.pad(wflat, ((0, Cin), (0, 0)))                  # taps 0..8 -> even frame
    w_odd = jnp.pad(wflat, ((Cin, 0), (0, 0)))                   # taps 1..9 -> odd frame
    wms2 = jnp.concatenate([w_even, w_odd], axis=-1)             # (10*Cin, 8H)
    bms = jnp.concatenate(b_parts, axis=0)                       # (4H,)
    bms2 = jnp.concatenate([bms, bms], axis=0).reshape(1, 8 * H)

    gamma, beta, mean, var = bn2
    s = gamma / jnp.sqrt(var + _BN_EPS)
    # torch Conv2d weight (H, H, kh=4, kw=2) -> rows ordered (kw, kh, ci) -> (8H, H)
    wf = jnp.transpose(conv2_w, (3, 2, 1, 0)).reshape(8 * H, H) * s[None, :]
    bf = ((conv2_b - mean) * s + beta).reshape(1, H)
    return dict(wms=wms2.astype(jnp.bfloat16), bms=bms2,
                wf=wf.astype(jnp.bfloat16), bf=bf)


def init_params(key, H, V, heads=8, layers=2, rpe_k=8):
    keys = iter(jax.random.split(key, 256))

    def nk():
        return next(keys)

    def conv1d_p(cin, cout, k):
        bound = 1.0 / np.sqrt(cin * k)
        return _uniform(nk(), (cout, cin, k), bound), _uniform(nk(), (cout,), bound)

    def conv2d_p(cin, cout):
        bound = 1.0 / np.sqrt(cin * 8)
        return _uniform(nk(), (cout, cin, 4, 2), bound), _uniform(nk(), (cout,), bound)

    def bn_p(c):
        g = 1.0 + 0.1 * jax.random.normal(nk(), (c,), jnp.float32)
        b = 0.1 * jax.random.normal(nk(), (c,), jnp.float32)
        m = 0.1 * jax.random.normal(nk(), (c,), jnp.float32)
        v = 1.0 + 0.1 * jax.random.uniform(nk(), (c,), jnp.float32)
        return g, b, m, v

    def linear_p(cin, cout):
        bound = 1.0 / np.sqrt(cin)
        return _uniform(nk(), (cin, cout), bound), _uniform(nk(), (cout,), bound)

    def cls_p(cin, cout):
        w, b = linear_p(cin, cout)
        return w.astype(jnp.bfloat16), b

    def stage(ch):
        ws, bs, bns = [], [], []
        for k in (3, 5, 7, 9):
            w, b = conv1d_p(ch, ch, k)
            ws.append(w); bs.append(b); bns.append(bn_p(ch))
        w2, b2 = conv2d_p(ch, ch)
        return _fold_stage(ws, bs, bns, w2, b2, bn_p(ch))

    stage1 = stage(H)
    stage2 = stage(H)

    tlayers = []
    for _ in range(layers):
        wq, bq = linear_p(H, H)
        wk, bk = linear_p(H, H)
        wv, bv = linear_p(H, H)
        wo, bo = linear_p(H, H)
        w1, b1 = linear_p(H, 4 * H)
        w2, b2 = linear_p(4 * H, H)
        tlayers.append(dict(
            wqkv=jnp.concatenate([wq, wk, wv], axis=1).astype(jnp.bfloat16),
            bqkv=jnp.concatenate([bq, bk, bv], axis=0).reshape(1, 3 * H),
            wo=wo.astype(jnp.bfloat16), bo=bo.reshape(1, H),
            w1=w1.astype(jnp.bfloat16), b1=b1.reshape(1, 4 * H),
            w2=w2.astype(jnp.bfloat16), b2=b2.reshape(1, H),
            ln=jnp.concatenate([jnp.ones((1, H), jnp.float32),
                                jnp.zeros((1, H), jnp.float32),
                                jnp.ones((1, H), jnp.float32),
                                jnp.zeros((1, H), jnp.float32)], axis=0),
            rpe=0.02 * jax.random.normal(nk(), (heads, 2 * rpe_k + 1), jnp.float32),
        ))

    return dict(
        stage1=stage1, stage2=stage2,
        transformer=dict(layers=tlayers),
        cls1=cls_p(H, V), cls2=cls_p(H, V),
        cls3=cls_p(H, V), cls4=cls_p(H, V),
    )


# ------------------------------ model forward ------------------------------

def mstnet_forward(seq_bct, len_list, params):
    """seq_bct: (B, C, T) like the PyTorch NCT input; len_list: list of (1,) int arrays."""
    B, C, T = seq_bct.shape
    x = jnp.transpose(seq_bct, (0, 2, 1)).astype(jnp.float32)     # (B, T, C) channels-last

    input_data1 = msconv_stage(x, params["stage1"])               # (B, T//2, H) == inputData1
    input_data = msconv_stage(input_data1, params["stage2"])      # (B, T//4, H) == inputData

    lgt = jnp.concatenate(len_list, axis=0) // 4

    enc = transformer_encoder(input_data, params["transformer"], heads=8, rpe_k=8)

    log_probs1, log_probs2 = classify_pair(enc, input_data, params["cls1"], params["cls2"])
    log_probs3 = classify(input_data1, params["cls3"])            # (T//2, B, V)
    log_probs4 = classify(x, params["cls4"])                      # (T,    B, V)
    return log_probs1, log_probs2, log_probs3, log_probs4, lgt


# ------------------------------ demo / smoke test ------------------------------

if __name__ == "__main__":
    key = jax.random.PRNGKey(0)
    B, H, T, V = 2, 32, 16, 64            # batch, hiddenSize, seq len, wordSetNum
    k_x, k_p = jax.random.split(key)
    seq = jax.random.normal(k_x, (B, H, T), jnp.float32)          # PyTorch-style NCT
    len_x = [jnp.array([T], jnp.int32) for _ in range(B)]         # list, as in forward()

    params = init_params(k_p, H, V)
    out = jax.block_until_ready(mstnet_forward(seq, len_x, params))
    lp1, lp2, lp3, lp4, lgt = out

    assert lp1.shape == (T // 4, B, V)
    assert lp2.shape == (T // 4, B, V)
    assert lp3.shape == (T // 2, B, V)
    assert lp4.shape == (T, B, V)
    assert lgt.shape == (B,)
    # log-softmax rows must sum to 1 in prob space
    assert bool(jnp.allclose(jnp.sum(jnp.exp(lp1), axis=-1), 1.0, atol=1e-4))
    assert bool(jnp.allclose(jnp.sum(jnp.exp(lp4), axis=-1), 1.0, atol=1e-4))
    print("KERNEL_OK")
</pallas_src>

<mosaic_0001>
module attributes {stable_mosaic.version = 11 : i64} {
  func.func @_stage_kernel(%arg0: i32, %arg1: memref<1x12x64xf32, #tpu.memory_space<vmem>>, %arg2: memref<320x256xbf16, #tpu.memory_space<vmem>>, %arg3: memref<1x256xf32, #tpu.memory_space<vmem>>, %arg4: memref<256x32xbf16, #tpu.memory_space<vmem>>, %arg5: memref<1x32xf32, #tpu.memory_space<vmem>>, %arg6: memref<1x8x32xf32, #tpu.memory_space<vmem>>) attributes {dimension_semantics = [#tpu.dimension_semantics<parallel>], iteration_bounds = array<i64: 2>, scalar_prefetch = 0 : i64, scratch_operands = 0 : i64, tpu.core_type = #tpu.core_type<tc>, window_params = [{transform_indices = @transform_0, window_bounds = array<i64: 1, 12, 64>}, {pipeline_mode = #tpu.pipeline_mode<synchronous>, transform_indices = @transform_1, window_bounds = array<i64: 320, 256>}, {pipeline_mode = #tpu.pipeline_mode<synchronous>, transform_indices = @transform_2, window_bounds = array<i64: 1, 256>}, {pipeline_mode = #tpu.pipeline_mode<synchronous>, transform_indices = @transform_3, window_bounds = array<i64: 256, 32>}, {pipeline_mode = #tpu.pipeline_mode<synchronous>, transform_indices = @transform_4, window_bounds = array<i64: 1, 32>}, {transform_indices = @transform_5, window_bounds = array<i64: 1, 8, 32>}]} {
    %c0 = arith.constant 0 : index
    %c0_0 = arith.constant 0 : index
    %c0_1 = arith.constant 0 : index
    %0 = vector.load %arg1[%c0, %c0_0, %c0_1] : memref<1x12x64xf32, #tpu.memory_space<vmem>>, vector<1x12x64xf32>
    %1 = vector.shape_cast %0 : vector<1x12x64xf32> to vector<12x64xf32>
    %2 = vector.extract_strided_slice %1 {offsets = [0, 0], sizes = [8, 32], strides = [1, 1]} : vector<12x64xf32> to vector<8x32xf32>
    %3 = vector.extract_strided_slice %1 {offsets = [0, 32], sizes = [8, 32], strides = [1, 1]} : vector<12x64xf32> to vector<8x32xf32>
    %4 = vector.extract_strided_slice %1 {offsets = [1, 0], sizes = [8, 32], strides = [1, 1]} : vector<12x64xf32> to vector<8x32xf32>
    %5 = vector.extract_strided_slice %1 {offsets = [1, 32], sizes = [8, 32], strides = [1, 1]} : vector<12x64xf32> to vector<8x32xf32>
    %6 = vector.extract_strided_slice %1 {offsets = [2, 0], sizes = [8, 32], strides = [1, 1]} : vector<12x64xf32> to vector<8x32xf32>
    %7 = vector.extract_strided_slice %1 {offsets = [2, 32], sizes = [8, 32], strides = [1, 1]} : vector<12x64xf32> to vector<8x32xf32>
    %8 = vector.extract_strided_slice %1 {offsets = [3, 0], sizes = [8, 32], strides = [1, 1]} : vector<12x64xf32> to vector<8x32xf32>
    %9 = vector.extract_strided_slice %1 {offsets = [3, 32], sizes = [8, 32], strides = [1, 1]} : vector<12x64xf32> to vector<8x32xf32>
    %10 = vector.extract_strided_slice %1 {offsets = [4, 0], sizes = [8, 32], strides = [1, 1]} : vector<12x64xf32> to vector<8x32xf32>
    %11 = vector.extract_strided_slice %1 {offsets = [4, 32], sizes = [8, 32], strides = [1, 1]} : vector<12x64xf32> to vector<8x32xf32>
    %12 = tpu.concatenate %2, %3, %4, %5, %6, %7, %8, %9, %10, %11 in 1 : vector<8x32xf32>, vector<8x32xf32>, vector<8x32xf32>, vector<8x32xf32>, vector<8x32xf32>, vector<8x32xf32>, vector<8x32xf32>, vector<8x32xf32>, vector<8x32xf32>, vector<8x32xf32> -> vector<8x320xf32>
    %13 = arith.truncf %12 : vector<8x320xf32> to vector<8x320xbf16>
    %c0_2 = arith.constant 0 : index
    %c0_3 = arith.constant 0 : index
    %14 = vector.load %arg2[%c0_2, %c0_3] : memref<320x256xbf16, #tpu.memory_space<vmem>>, vector<320x256xbf16>
    %cst = arith.constant dense<0.000000e+00> : vector<8x256xf32>
    %15 = tpu.matmul %13, %14, %cst {dimension_numbers = #tpu.dot_dimension_numbers<[1], [0], [0], [1], [0, 0, 1, 1], [], []>} : vector<8x320xbf16>, vector<320x256xbf16>, vector<8x256xf32> -> vector<8x256xf32>
    %c0_4 = arith.constant 0 : index
    %c0_5 = arith.constant 0 : index
    %16 = vector.load %arg3[%c0_4, %c0_5] : memref<1x256xf32, #tpu.memory_space<vmem>>, vector<1x256xf32>
    %17 = vector.broadcast %16 : vector<1x256xf32> to vector<8x256xf32>
    %18 = arith.addf %15, %17 : vector<8x256xf32>
    %cst_6 = arith.constant 0.000000e+00 : f32
    %19 = vector.broadcast %cst_6 : f32 to vector<8x256xf32>
    %20 = arith.maximumf %18, %19 : vector<8x256xf32>
    %21 = arith.truncf %20 : vector<8x256xf32> to vector<8x256xbf16>
    %c0_7 = arith.constant 0 : index
    %c0_8 = arith.constant 0 : index
    %22 = vector.load %arg4[%c0_7, %c0_8] : memref<256x32xbf16, #tpu.memory_space<vmem>>, vector<256x32xbf16>
    %cst_9 = arith.constant dense<0.000000e+00> : vector<8x32xf32>
    %23 = tpu.matmul %21, %22, %cst_9 {dimension_numbers = #tpu.dot_dimension_numbers<[1], [0], [0], [1], [0, 0, 1, 1], [], []>} : vector<8x256xbf16>, vector<256x32xbf16>, vector<8x32xf32> -> vector<8x32xf32>
    %c0_10 = arith.constant 0 : index
    %c0_11 = arith.constant 0 : index
    %24 = vector.load %arg5[%c0_10, %c0_11] : memref<1x32xf32, #tpu.memory_space<vmem>>, vector<1x32xf32>
    %25 = vector.broadcast %24 : vector<1x32xf32> to vector<8x32xf32>
    %26 = arith.addf %23, %25 : vector<8x32xf32>
    %cst_12 = arith.constant 0.000000e+00 : f32
    %27 = vector.broadcast %cst_12 : f32 to vector<8x32xf32>
    %28 = arith.maximumf %26, %27 : vector<8x32xf32>
    %c0_13 = arith.constant 0 : index
    %c0_14 = arith.constant 0 : index
    %c0_15 = arith.constant 0 : index
    %29 = vector.load %arg6[%c0_13, %c0_14, %c0_15] : memref<1x8x32xf32, #tpu.memory_space<vmem>>, vector<1x8x32xf32>
    %30 = vector.shape_cast %29 : vector<1x8x32xf32> to vector<8x32xf32>
    %31 = vector.shape_cast %28 : vector<8x32xf32> to vector<1x8x32xf32>
    tpu.vector_store %arg6[%c0_13, %c0_14, %c0_15], %31 {strides = array<i32>} : memref<1x8x32xf32, #tpu.memory_space<vmem>>, vector<1x8x32xf32>,
    return
  }
  func.func @transform_0(%arg0: i32) -> (i32, i32, i32) {
    %c0_i32 = arith.constant 0 : i32
    %c0_i32_0 = arith.constant 0 : i32
    %c0_i32_1 = arith.constant 0 : i32
    return %arg0, %c0_i32, %c0_i32_0 : i32, i32, i32
  }
  func.func @transform_1(%arg0: i32) -> (i32, i32) {
    %c0_i32 = arith.constant 0 : i32
    %c0_i32_0 = arith.constant 0 : i32
    %c0_i32_1 = arith.constant 0 : i32
    return %c0_i32, %c0_i32_0 : i32, i32
  }
  func.func @transform_2(%arg0: i32) -> (i32, i32) {
    %c0_i32 = arith.constant 0 : i32
    %c0_i32_0 = arith.constant 0 : i32
    %c0_i32_1 = arith.constant 0 : i32
    return %c0_i32, %c0_i32_0 : i32, i32
  }
  func.func @transform_3(%arg0: i32) -> (i32, i32) {
    %c0_i32 = arith.constant 0 : i32
    %c0_i32_0 = arith.constant 0 : i32
    %c0_i32_1 = arith.constant 0 : i32
    return %c0_i32, %c0_i32_0 : i32, i32
  }
  func.func @transform_4(%arg0: i32) -> (i32, i32) {
    %c0_i32 = arith.constant 0 : i32
    %c0_i32_0 = arith.constant 0 : i32
    %c0_i32_1 = arith.constant 0 : i32
    return %c0_i32, %c0_i32_0 : i32, i32
  }
  func.func @transform_5(%arg0: i32) -> (i32, i32, i32) {
    %c0_i32 = arith.constant 0 : i32
    %c0_i32_0 = arith.constant 0 : i32
    %c0_i32_1 = arith.constant 0 : i32
    return %arg0, %c0_i32, %c0_i32_0 : i32, i32, i32
  }
}

</mosaic_0001>

<llo_original>
// kernel: tpu_custom_call.1
$region0: #{tpu_custom_call.1}
  #allocation0 [shape = 'u32[]', space=smem, size = 0x4, offset = 0x4, fixed_abs, tag = 'smem constant byte address 0x4 - core index']
  #allocation1 [shape = 'u32[72,128]{1,0:T(1,128)}', space=vmem, size = 0x9000, scoped, tag = 'internal scratch']
  %s0 = inlined_call_operand.vmem [shape: f32[2,12,64], index: 0, kind: input, shape index: {}]
  %s1 = inlined_call_operand.hbm [shape: bf16[320,256], index: 1, kind: input, shape index: {}]
  %s2 = inlined_call_operand.vmem [shape: f32[1,256], index: 2, kind: input, shape index: {}]
  %s3 = inlined_call_operand.vmem [shape: bf16[256,32], index: 3, kind: input, shape index: {}]
  %s4 = inlined_call_operand.vmem [shape: f32[1,32], index: 4, kind: input, shape index: {}]
  %s5 = inlined_call_operand.hbm [shape: f32[2,8,32], index: 5, kind: output, shape index: {}]
  %s6 = sld [smem:[#allocation0]]
  $region57: #{tpu_custom_call.1} parent=0
    _
  %s8 = ssub.s32 1, %s6
  %s9 = scalar_select 0, %s8, %s6
  $region1: #{tpu_custom_call.1} parent=0
    #allocation2 [shape = 'u8[163840]{0}', space=vmem, size = 0x28000, scoped, tag = 'input window, operand 1, single buffered']
    #allocation3 [shape = 's32[2]{0}', space=sflag, size = 0x8, scoped, tag = 'scoped memory for tpu_custom_call.1']
    #allocation4 [shape = 's32[2]{0}', space=sflag, size = 0x8, scoped, tag = 'scoped memory for tpu_custom_call.1']
    #allocation5 [shape = 'u8[8192]{0}', space=vmem, size = 0x2000, scoped, tag = 'output window, operand 0']
    %10 = vsyncpa [#allocation3], 0
    %11 = vsyncpa [#allocation4], 0
    %s12 = scalar_lea.sflag [#allocation4], 1
    %13 = vsyncpa %s12, 0
    loop: start=0, step=1, limit=4
    $region2: #{tpu_custom_call.1} parent=1 // loop_pre_header
      _
    $region3: #{tpu_custom_call.1} parent=1 // loop_header
      %s15 = sphi 0, %s19
      %p16 = scmp.ge.s32.totalorder %s15, 4
      %s25 = sphi 0, %s27
      %s28 = sphi 0, %s25
      %s29 = sphi 0, %s28
      %s45 = sphi 0, %s29
      %s49 = sphi 0, %s49
      %s51 = sphi 0, %s49
      %s52 = sphi 0, %s51
      %s66 = sphi 0, %s52
      %s70 = sphi 0, %s70
      %s72 = sphi 0, %s70
      %s73 = sphi 0, %s72
      %s87 = sphi 0, %s73
      %s91 = sphi 0, %s91
      %s93 = sphi 0, %s91
      %s94 = sphi 0, %s93
      %s108 = sphi 0, %s94
      %s112 = sphi 0, %s112
      %s114 = sphi 0, %s112
      %s115 = sphi 0, %s114
      %s129 = sphi 0, %s115
      %s135 = sphi 0, %s137
      %s138 = sphi 0, %s135
      %s139 = sphi 0, %s138
      %s155 = sphi 0, %s139
    $region4: #{tpu_custom_call.1} parent=1 // loop_header_branch
      %18 = sbr.rel (%p16) target = $region8
    $region5: #{tpu_custom_call.1} parent=1 // loop_body
      %s20 = ssub.s32 %s15, 1
      %s21 = ssub.s32 %s15, 2
      %s22 = sadd.s32 %s15, 1
      %s23 = ssub.s32 %s15, %s22
      %p24 = scmp.eq.s32.totalorder %s23, 0
      %s26 = sadd.s32 %s25, 1
      %s27 = scalar_select %p24, %s25, %s26
      %p30 = pneg %p24
      %p31 = scmp.eq.s32.totalorder %s15, 1
      %p32 = por %p30, %p31
      %p33 = scmp.ne.s32.totalorder %s25, %s28
      %p34 = scmp.eq.s32.totalorder %s15, 0
      %p35 = por %p33, %p34
      %p36 = scmp.ne.s32.totalorder %s25, %s28
      %p37 = scmp.eq.s32.totalorder %s20, 1
      %p38 = por %p36, %p37
      %p39 = scmp.ne.s32.totalorder %s28, %s29
      %p40 = scmp.eq.s32.totalorder %s20, 0
      %p41 = por %p39, %p40
      %p42 = scmp.ne.s32.totalorder %s28, %s29
      %p43 = scmp.eq.s32.totalorder %s21, 1
      %p44 = por %p42, %p43
      %p46 = scmp.ne.s32.totalorder %s29, %s45
      %p47 = scmp.eq.s32.totalorder %s21, 0
      %p48 = por %p46, %p47
      %s50 = sadd.s32 %s49, 1
      %p53 = scmp.eq.s32.totalorder %s15, 1
      %p54 = scmp.ne.s32.totalorder %s49, %s51
      %p55 = scmp.eq.s32.totalorder %s15, 0
      %p56 = por %p54, %p55
      %p57 = scmp.ne.s32.totalorder %s49, %s51
      %p58 = scmp.eq.s32.totalorder %s20, 1
      %p59 = por %p57, %p58
      %p60 = scmp.ne.s32.totalorder %s51, %s52
      %p61 = scmp.eq.s32.totalorder %s20, 0
      %p62 = por %p60, %p61
      %p63 = scmp.ne.s32.totalorder %s51, %s52
      %p64 = scmp.eq.s32.totalorder %s21, 1
      %p65 = por %p63, %p64
      %p67 = scmp.ne.s32.totalorder %s52, %s66
      %p68 = scmp.eq.s32.totalorder %s21, 0
      %p69 = por %p67, %p68
      %s71 = sadd.s32 %s70, 1
      %p74 = scmp.eq.s32.totalorder %s15, 1
      %p75 = scmp.ne.s32.totalorder %s70, %s72
      %p76 = scmp.eq.s32.totalorder %s15, 0
      %p77 = por %p75, %p76
      %p78 = scmp.ne.s32.totalorder %s70, %s72
      %p79 = scmp.eq.s32.totalorder %s20, 1
      %p80 = por %p78, %p79
      %p81 = scmp.ne.s32.totalorder %s72, %s73
      %p82 = scmp.eq.s32.totalorder %s20, 0
      %p83 = por %p81, %p82
      %p84 = scmp.ne.s32.totalorder %s72, %s73
      %p85 = scmp.eq.s32.totalorder %s21, 1
      %p86 = por %p84, %p85
      %p88 = scmp.ne.s32.totalorder %s73, %s87
      %p89 = scmp.eq.s32.totalorder %s21, 0
      %p90 = por %p88, %p89
      %s92 = sadd.s32 %s91, 1
      %p95 = scmp.eq.s32.totalorder %s15, 1
      %p96 = scmp.ne.s32.totalorder %s91, %s93
      %p97 = scmp.eq.s32.totalorder %s15, 0
      %p98 = por %p96, %p97
      %p99 = scmp.ne.s32.totalorder %s91, %s93
      %p100 = scmp.eq.s32.totalorder %s20, 1
      %p101 = por %p99, %p100
      %p102 = scmp.ne.s32.totalorder %s93, %s94
      %p103 = scmp.eq.s32.totalorder %s20, 0
      %p104 = por %p102, %p103
      %p105 = scmp.ne.s32.totalorder %s93, %s94
      %p106 = scmp.eq.s32.totalorder %s21, 1
      %p107 = por %p105, %p106
      %p109 = scmp.ne.s32.totalorder %s94, %s108
      %p110 = scmp.eq.s32.totalorder %s21, 0
      %p111 = por %p109, %p110
      %s113 = sadd.s32 %s112, 1
      %p116 = scmp.eq.s32.totalorder %s15, 1
      %p117 = scmp.ne.s32.totalorder %s112, %s114
      %p118 = scmp.eq.s32.totalorder %s15, 0
      %p119 = por %p117, %p118
      %p120 = scmp.ne.s32.totalorder %s112, %s114
      %p121 = scmp.eq.s32.totalorder %s20, 1
      %p122 = por %p120, %p121
      %p123 = scmp.ne.s32.totalorder %s114, %s115
      %p124 = scmp.eq.s32.totalorder %s20, 0
      %p125 = por %p123, %p124
      %p126 = scmp.ne.s32.totalorder %s114, %s115
      %p127 = scmp.eq.s32.totalorder %s21, 1
      %p128 = por %p126, %p127
      %p130 = scmp.ne.s32.totalorder %s115, %s129
      %p131 = scmp.eq.s32.totalorder %s21, 0
      %p132 = por %p130, %p131
      %s133 = ssub.s32 %s15, %s22
      %p134 = scmp.eq.s32.totalorder %s133, 0
      %s136 = sadd.s32 %s135, 1
      %s137 = scalar_select %p134, %s135, %s136
      %p140 = pneg %p134
      %p141 = scmp.eq.s32.totalorder %s15, 1
      %p142 = por %p140, %p141
      %p143 = scmp.ne.s32.totalorder %s135, %s138
      %p144 = scmp.eq.s32.totalorder %s15, 0
      %p145 = por %p143, %p144
      %p146 = scmp.ne.s32.totalorder %s135, %s138
      %p147 = scmp.eq.s32.totalorder %s20, 1
      %p148 = por %p146, %p147
      %p149 = scmp.ne.s32.totalorder %s138, %s139
      %p150 = scmp.eq.s32.totalorder %s20, 0
      %p151 = por %p149, %p150
      %p152 = scmp.ne.s32.totalorder %s138, %s139
      %p153 = scmp.eq.s32.totalorder %s21, 1
      %p154 = por %p152, %p153
      %p156 = scmp.ne.s32.totalorder %s139, %s155
      %p157 = scmp.eq.s32.totalorder %s21, 0
      %p158 = por %p156, %p157
      %p159 = scmp.le.s32.totalorder 1, %s15
      %p160 = scmp.lt.s32.totalorder %s15, 3
      %p161 = pnand %p159, %p160
      %p162 = pneg %p161
      // Predicated region
      $region9: #{tpu_custom_call.1} parent=5 // pred_check
        _
      $region10: #{tpu_custom_call.1} parent=5 // pred_check_branch
        %164 = sbr.rel (%p161) target = $region12
      $region11: #{tpu_custom_call.1} parent=5 // pred_region
        %s165 = ssub.s32 %s15, 1
        // Predicated region
        $region13: #{tpu_custom_call.1} parent=11 // pred_check
          %p166 = pneg %p62
        $region14: #{tpu_custom_call.1} parent=11 // pred_check_branch
          %168 = sbr.rel (%p166) target = $region16
        $region15: #{tpu_custom_call.1} parent=11 // pred_region
          %170 = vsyncadd [#allocation3], 0
          %s171 = sshll.u32 %s1, 4
          %s172 = int_to_ptr.hbm [resolvable:$true] %s171
          %s173 = sshll.u32 [#allocation2], 4
          %s174 = int_to_ptr.vmem [resolvable:$true] %s173
          %179 = dma.hbm_to_vmem [thread:$0]  %s172, 5120, %s174, [#allocation3], 128, 128, 8
        $region16: #{tpu_custom_call.1} parent=11 // pred_fallthru
          _
        // Predicated region
        $region17: #{tpu_custom_call.1} parent=11 // pred_check
          %p180 = pneg %p83
        $region18: #{tpu_custom_call.1} parent=11 // pred_check_branch
          %182 = sbr.rel (%p180) target = $region20
        $region19: #{tpu_custom_call.1} parent=11 // pred_region
          _
        $region20: #{tpu_custom_call.1} parent=11 // pred_fallthru
          _
        // Predicated region
        $region21: #{tpu_custom_call.1} parent=11 // pred_check
          %p183 = pneg %p104
        $region22: #{tpu_custom_call.1} parent=11 // pred_check_branch
          %185 = sbr.rel (%p183) target = $region24
        $region23: #{tpu_custom_call.1} parent=11 // pred_region
          _
        $region24: #{tpu_custom_call.1} parent=11 // pred_fallthru
          _
        // Predicated region
        $region25: #{tpu_custom_call.1} parent=11 // pred_check
          %p186 = pneg %p125
        $region26: #{tpu_custom_call.1} parent=11 // pred_check_branch
          %188 = sbr.rel (%p186) target = $region28
        $region27: #{tpu_custom_call.1} parent=11 // pred_region
          _
        $region28: #{tpu_custom_call.1} parent=11 // pred_fallthru
          _
      $region12: #{tpu_custom_call.1} parent=5 // pred_fallthru
        _
      %p189 = scmp.lt.s32.totalorder %s15, 2
      // Predicated region
      $region29: #{tpu_custom_call.1} parent=5 // pred_check
        %p190 = pneg %p189
      $region30: #{tpu_custom_call.1} parent=5 // pred_check_branch
        %192 = sbr.rel (%p190) target = $region32
      $region31: #{tpu_custom_call.1} parent=5 // pred_region
        // Predicated region
        $region33: #{tpu_custom_call.1} parent=31 // pred_check
          %p193 = pneg %p35
        $region34: #{tpu_custom_call.1} parent=31 // pred_check_branch
          %195 = sbr.rel (%p193) target = $region36
        $region35: #{tpu_custom_call.1} parent=31 // pred_region
          %p196 = scmp.lt.s32.totalorder %s15, 1
          %s197 = scalar_select %p196, %s15, 1
          %s198 = smul.addr %s197, 2
          %s199 = smul.addr %s198, 8
          %s200 = scalar_lea.vmem %s0, %s199
        $region36: #{tpu_custom_call.1} parent=31 // pred_fallthru
          _
      $region32: #{tpu_custom_call.1} parent=5 // pred_fallthru
        _
      %p201 = scmp.le.s32.totalorder 1, %s15
      %p202 = scmp.lt.s32.totalorder %s15, 3
      %p203 = pnand %p201, %p202
      %p204 = pneg %p203
      // Predicated region
      $region37: #{tpu_custom_call.1} parent=5 // pred_check
        _
      $region38: #{tpu_custom_call.1} parent=5 // pred_check_branch
        %206 = sbr.rel (%p203) target = $region40
      $region39: #{tpu_custom_call.1} parent=5 // pred_region
        %s207 = ssub.s32 %s15, 1
        // Predicated region
        $region41: #{tpu_custom_call.1} parent=39 // pred_check
          %p208 = pneg %p62
        $region42: #{tpu_custom_call.1} parent=39 // pred_check_branch
          %210 = sbr.rel (%p208) target = $region44
        $region43: #{tpu_custom_call.1} parent=39 // pred_region
          %212 = dma.done [#allocation3], 5120
        $region44: #{tpu_custom_call.1} parent=39 // pred_fallthru
          _
        %p213 = scmp.lt.s32.totalorder %s20, 1
        %s214 = scalar_select %p213, %s20, 1
        %s215 = smul.addr %s214, 2
        %s216 = smul.addr %s215, 8
        %s217 = scalar_lea.vmem %s0, %s216
        %p218 = pneg %p41
        %p219 = pneg %p38
        %p220 = pneg %p62
        %p221 = pneg %p59
        %p222 = pneg %p83
        %p223 = pneg %p80
        %p224 = pneg %p104
        %p225 = pneg %p101
        %p226 = pneg %p125
        %p227 = pneg %p122
        %p228 = pneg %p151
        %p229 = pneg %p148
        %s230 = sand.u32 %s138, 1
        %s231 = scalar_lea.sflag [#allocation4], %s230
        %s232 = sand.u32 %s138, 1
        %s233 = smul.addr %s232, 8
        %s234 = scalar_lea.vmem [#allocation5], %s233
        %p235 = scmp.lt.s32.totalorder %s20, 1
        %s236 = scalar_select %p235, %s20, 1
        %s237 = smul.addr %s236, 2
        %s238 = smul.addr %s237, 8
        %s239 = scalar_lea.vmem %s0, %s238
        %v241 = vld [vmem:[%s239] sm:$0xff]
        %v242 = vld [vmem:[%s239 + $0x8] sm:$0xf]
        %vm245 = vcmask 1046528
        %v246 = vrot.slane %v241, 1
        %v247 = vrot.slane %v242, 1
        %v248 = vsel %vm245, %v246, %v247
        %249 = vrot.lane.b32.xlu0 %v248, 64
        %v250 = vpop.permute.xlu0 %249
        %vm252 = vcmask 1045504
        %v253 = vrot.slane %v241, 2
        %v254 = vrot.slane %v242, 2
        %v255 = vsel %vm252, %v253, %v254
        %vm257 = vcmask 1044480
        %v258 = vrot.slane %v241, 3
        %v259 = vrot.slane %v242, 3
        %v260 = vsel %vm257, %v258, %v259
        %261 = vrot.lane.b32.xlu0 %v260, 64
        %v262 = vpop.permute.xlu0 %261
        %vm264 = vcmask 1043456
        %v265 = vrot.slane %v241, 4
        %v266 = vrot.slane %v242, 4
        %v267 = vsel %vm264, %v265, %v266
        %vm269 = vcmask 523264
        %v270 = vsel %vm269, %v241, %v250
        %vm271 = vcmask 785408
        %v272 = vsel %vm271, %v270, %v250
        %vm273 = vcmask 261120
        %v274 = vsel %vm269, %v255, %v262
        %v275 = vsel %vm271, %v274, %v262
        %v276 = vpack.c.bf16 %v272, %v272
        %v277 = vpack.c.bf16 %v275, %v275
        %v278 = vpack.c.bf16 %v267, %v267
        %v279 = vld [vmem:[#allocation2] sm:$0xff]
        %v280 = vld [vmem:[#allocation2 + $0x8] sm:$0xff]
        %v281 = vld [vmem:[#allocation2 + $0x10] sm:$0xff]
        %v282 = vld [vmem:[#allocation2 + $0x18] sm:$0xff]
        %v283 = vld [vmem:[#allocation2 + $0x20] sm:$0xff]
        %v284 = vld [vmem:[#allocation2 + $0x28] sm:$0xff]
        %v285 = vld [vmem:[#allocation2 + $0x30] sm:$0xff]
        %v286 = vld [vmem:[#allocation2 + $0x38] sm:$0xff]
        %v287 = vld [vmem:[#allocation2 + $0x40] sm:$0xff]
        %v288 = vld [vmem:[#allocation2 + $0x48] sm:$0xff]
        %v289 = vld [vmem:[#allocation2 + $0x50] sm:$0xff]
        %v290 = vld [vmem:[#allocation2 + $0x58] sm:$0xff]
        %v291 = vld [vmem:[#allocation2 + $0x60] sm:$0xff]
        %v292 = vld [vmem:[#allocation2 + $0x68] sm:$0xff]
        %v293 = vld [vmem:[#allocation2 + $0x70] sm:$0xff]
        %v294 = vld [vmem:[#allocation2 + $0x78] sm:$0xff]
        %v295 = vld [vmem:[#allocation2 + $0x80] sm:$0xff]
        %v296 = vld [vmem:[#allocation2 + $0x88] sm:$0xff]
        %v297 = vld [vmem:[#allocation2 + $0x90] sm:$0xff]
        %v298 = vld [vmem:[#allocation2 + $0x98] sm:$0xff]
        %v299 = vld [vmem:[#allocation2 + $0xa0] sm:$0xff]
        %v300 = vld [vmem:[#allocation2 + $0xa8] sm:$0xff]
        %v301 = vld [vmem:[#allocation2 + $0xb0] sm:$0xff]
        %v302 = vld [vmem:[#allocation2 + $0xb8] sm:$0xff]
        %v303 = vld [vmem:[#allocation2 + $0xc0] sm:$0xff]
        %v304 = vld [vmem:[#allocation2 + $0xc8] sm:$0xff]
        %v305 = vld [vmem:[#allocation2 + $0xd0] sm:$0xff]
        %v306 = vld [vmem:[#allocation2 + $0xd8] sm:$0xff]
        %v307 = vld [vmem:[#allocation2 + $0xe0] sm:$0xff]
        %v308 = vld [vmem:[#allocation2 + $0xe8] sm:$0xff]
        %v309 = vld [vmem:[#allocation2 + $0xf0] sm:$0xff]
        %v310 = vld [vmem:[#allocation2 + $0xf8] sm:$0xff]
        %v311 = vld [vmem:[#allocation2 + $0x100] sm:$0xff]
        %v312 = vld [vmem:[#allocation2 + $0x108] sm:$0xff]
        %v313 = vld [vmem:[#allocation2 + $0x110] sm:$0xff]
        %v314 = vld [vmem:[#allocation2 + $0x118] sm:$0xff]
        %v315 = vld [vmem:[#allocation2 + $0x120] sm:$0xff]
        %v316 = vld [vmem:[#allocation2 + $0x128] sm:$0xff]
        %v317 = vld [vmem:[#allocation2 + $0x130] sm:$0xff]
        %v318 = vld [vmem:[#allocation2 + $0x138] sm:$0xff]
        %v319 = vld [vmem:[%s2] sm:$0x3]
        %v321 = vperm.slane %v319, 0
        %v322 = vperm.slane %v319, 1
        %v365 = vunpack.c.l.b16 %v279
        %v366 = vunpack.c.h.b16 %v279
        %v367 = vunpack.c.l.b16 %v280
        %v368 = vunpack.c.h.b16 %v280
        %v369 = vunpack.c.l.b16 %v281
        %v370 = vunpack.c.h.b16 %v281
        %v371 = vunpack.c.l.b16 %v282
        %v372 = vunpack.c.h.b16 %v282
        %v373 = vunpack.c.l.b16 %v283
        %v374 = vunpack.c.h.b16 %v283
        %v375 = vunpack.c.l.b16 %v284
        %v376 = vunpack.c.h.b16 %v284
        %v377 = vunpack.c.l.b16 %v285
        %v378 = vunpack.c.h.b16 %v285
        %v379 = vunpack.c.l.b16 %v286
        %v380 = vunpack.c.h.b16 %v286
        %v381 = vunpack.c.l.b16 %v287
        %v382 = vunpack.c.h.b16 %v287
        %v383 = vunpack.c.l.b16 %v288
        %v384 = vunpack.c.h.b16 %v288
        %v385 = vunpack.c.l.b16 %v289
        %v386 = vunpack.c.h.b16 %v289
        %v387 = vunpack.c.l.b16 %v290
        %v388 = vunpack.c.h.b16 %v290
        %v389 = vunpack.c.l.b16 %v291
        %v390 = vunpack.c.h.b16 %v291
        %v391 = vunpack.c.l.b16 %v292
        %v392 = vunpack.c.h.b16 %v292
        %v393 = vunpack.c.l.b16 %v293
        %v394 = vunpack.c.h.b16 %v293
        %v395 = vunpack.c.l.b16 %v294
        %v396 = vunpack.c.h.b16 %v294
        %v397 = vunpack.c.l.b16 %v295
        %v398 = vunpack.c.h.b16 %v295
        %v399 = vunpack.c.l.b16 %v296
        %v400 = vunpack.c.h.b16 %v296
        %v401 = vunpack.c.l.b16 %v297
        %v402 = vunpack.c.h.b16 %v297
        %v403 = vunpack.c.l.b16 %v298
        %v404 = vunpack.c.h.b16 %v298
        %v405 = vunpack.c.l.b16 %v299
        %v406 = vunpack.c.h.b16 %v299
        %v407 = vunpack.c.l.b16 %v300
        %v408 = vunpack.c.h.b16 %v300
        %v409 = vunpack.c.l.b16 %v301
        %v410 = vunpack.c.h.b16 %v301
        %v411 = vunpack.c.l.b16 %v302
        %v412 = vunpack.c.h.b16 %v302
        %v413 = vunpack.c.l.b16 %v303
        %v414 = vunpack.c.h.b16 %v303
        %v415 = vunpack.c.l.b16 %v304
        %v416 = vunpack.c.h.b16 %v304
        %v417 = vunpack.c.l.b16 %v305
        %v418 = vunpack.c.h.b16 %v305
        %v419 = vunpack.c.l.b16 %v306
        %v420 = vunpack.c.h.b16 %v306
        %v421 = vunpack.c.l.b16 %v307
        %v422 = vunpack.c.h.b16 %v307
        %v423 = vunpack.c.l.b16 %v308
        %v424 = vunpack.c.h.b16 %v308
        %v425 = vunpack.c.l.b16 %v309
        %v426 = vunpack.c.h.b16 %v309
        %v427 = vunpack.c.l.b16 %v310
        %v428 = vunpack.c.h.b16 %v310
        %v429 = vunpack.c.l.b16 %v311
        %v430 = vunpack.c.h.b16 %v311
        %v431 = vunpack.c.l.b16 %v312
        %v432 = vunpack.c.h.b16 %v312
        %v433 = vunpack.c.l.b16 %v313
        %v434 = vunpack.c.h.b16 %v313
        %v435 = vunpack.c.l.b16 %v314
        %v436 = vunpack.c.h.b16 %v314
        %v437 = vunpack.c.l.b16 %v315
        %v438 = vunpack.c.h.b16 %v315
        %v439 = vunpack.c.l.b16 %v316
        %v440 = vunpack.c.h.b16 %v316
        %v441 = vunpack.c.l.b16 %v317
        %v442 = vunpack.c.h.b16 %v317
        %v443 = vunpack.c.l.b16 %v318
        %v444 = vunpack.c.h.b16 %v318
        %v445 = vpack.c.b16 %v367, %v365
        %v446 = vpack.c.b16 %v368, %v366
        %v447 = vpack.c.b16 %v371, %v369
        %v448 = vpack.c.b16 %v372, %v370
        %v449 = vpack.c.b16 %v375, %v373
        %v450 = vpack.c.b16 %v376, %v374
        %v451 = vpack.c.b16 %v379, %v377
        %v452 = vpack.c.b16 %v380, %v378
        %v453 = vpack.c.b16 %v383, %v381
        %v454 = vpack.c.b16 %v384, %v382
        %v455 = vpack.c.b16 %v387, %v385
        %v456 = vpack.c.b16 %v388, %v386
        %v457 = vpack.c.b16 %v391, %v389
        %v458 = vpack.c.b16 %v392, %v390
        %v459 = vpack.c.b16 %v395, %v393
        %v460 = vpack.c.b16 %v396, %v394
        %v461 = vpack.c.b16 %v399, %v397
        %v462 = vpack.c.b16 %v400, %v398
        %v463 = vpack.c.b16 %v403, %v401
        %v464 = vpack.c.b16 %v404, %v402
        %v465 = vpack.c.b16 %v407, %v405
        %v466 = vpack.c.b16 %v408, %v406
        %v467 = vpack.c.b16 %v411, %v409
        %v468 = vpack.c.b16 %v412, %v410
        %v469 = vpack.c.b16 %v415, %v413
        %v470 = vpack.c.b16 %v416, %v414
        %v471 = vpack.c.b16 %v419, %v417
        %v472 = vpack.c.b16 %v420, %v418
        %v473 = vpack.c.b16 %v423, %v421
        %v474 = vpack.c.b16 %v424, %v422
        %v475 = vpack.c.b16 %v427, %v425
        %v476 = vpack.c.b16 %v428, %v426
        %v477 = vpack.c.b16 %v431, %v429
        %v478 = vpack.c.b16 %v432, %v430
        %v479 = vpack.c.b16 %v435, %v433
        %v480 = vpack.c.b16 %v436, %v434
        %v481 = vpack.c.b16 %v439, %v437
        %v482 = vpack.c.b16 %v440, %v438
        %v483 = vpack.c.b16 %v443, %v441
        %v484 = vpack.c.b16 %v444, %v442
        %v526 = vsel %vm269, %v278, 0
        %528 = vmatpush.bf16.msra.mxu0 %v459
        %529 = vmatpush.bf16.msra.mxu0 %v457
        %530 = vmatpush.bf16.msra.mxu0 %v455
        %531 = vmatpush.bf16.msra.mxu0 %v453
        %532 = vmatpush.bf16.msra.mxu0 %v451
        %533 = vmatpush.bf16.msra.mxu0 %v449
        %534 = vmatpush.bf16.msra.mxu0 %v447
        %535 = vmatpush.bf16.msra.mxu0 %v445
        %536 = vmatmul.bf16.gmra.mxu0 %v276
        %v537 = vpop.f32.mrf.mxu0
        %v538 = vadd.f32 %v321, %v537
        %v539 = vpop.f32.mrf.mxu0
        %540 = vdwg.mxu0
        %541 = vmatpush.bf16.msra.mxu0 %v475
        %542 = vmatpush.bf16.msra.mxu0 %v473
        %543 = vmatpush.bf16.msra.mxu0 %v471
        %544 = vmatpush.bf16.msra.mxu0 %v469
        %545 = vmatpush.bf16.msra.mxu0 %v467
        %546 = vmatpush.bf16.msra.mxu0 %v465
        %547 = vmatpush.bf16.msra.mxu0 %v463
        %548 = vmatpush.bf16.msra.mxu0 %v461
        %549 = vmatmul.bf16.gmra.mxu0 %v277
        %v550 = vpop.f32.mrf.mxu0
        %v551 = vadd.f32 %v538, %v550
        %v552 = vpop.f32.mrf.mxu0
        %553 = vdwg.mxu0
        %554 = vmatpush.bf16.msra.mxu0 0
        %555 = vmatpush.bf16.msra.mxu0 0
        %556 = vmatpush.bf16.msra.mxu0 0
        %557 = vmatpush.bf16.msra.mxu0 0
        %558 = vmatpush.bf16.msra.mxu0 %v483
        %559 = vmatpush.bf16.msra.mxu0 %v481
        %560 = vmatpush.bf16.msra.mxu0 %v479
        %561 = vmatpush.bf16.msra.mxu0 %v477
        %562 = vmatmul.bf16.gmra.mxu0 %v526
        %v563 = vpop.f32.mrf.mxu0
        %v564 = vadd.f32 %v551, %v563
        %v565 = vpop.f32.mrf.mxu0
        %566 = vdwg.mxu0
        %567 = vmatpush.bf16.msra.mxu0 %v460
        %568 = vmatpush.bf16.msra.mxu0 %v458
        %569 = vmatpush.bf16.msra.mxu0 %v456
        %570 = vmatpush.bf16.msra.mxu0 %v454
        %571 = vmatpush.bf16.msra.mxu0 %v452
        %572 = vmatpush.bf16.msra.mxu0 %v450
        %573 = vmatpush.bf16.msra.mxu0 %v448
        %574 = vmatpush.bf16.msra.mxu0 %v446
        %575 = vmatmul.bf16.gmra.mxu0 %v276
        %v576 = vpop.f32.mrf.mxu0
        %v577 = vadd.f32 %v322, %v576
        %v578 = vpop.f32.mrf.mxu0
        %579 = vdwg.mxu0
        %580 = vmatpush.bf16.msra.mxu0 %v476
        %581 = vmatpush.bf16.msra.mxu0 %v474
        %582 = vmatpush.bf16.msra.mxu0 %v472
        %583 = vmatpush.bf16.msra.mxu0 %v470
        %584 = vmatpush.bf16.msra.mxu0 %v468
        %585 = vmatpush.bf16.msra.mxu0 %v466
        %586 = vmatpush.bf16.msra.mxu0 %v464
        %587 = vmatpush.bf16.msra.mxu0 %v462
        %588 = vmatmul.bf16.gmra.mxu0 %v277
        %v589 = vpop.f32.mrf.mxu0
        %v590 = vadd.f32 %v577, %v589
        %v591 = vpop.f32.mrf.mxu0
        %592 = vdwg.mxu0
        %593 = vmatpush.bf16.msra.mxu0 0
        %594 = vmatpush.bf16.msra.mxu0 0
        %595 = vmatpush.bf16.msra.mxu0 0
        %596 = vmatpush.bf16.msra.mxu0 0
        %597 = vmatpush.bf16.msra.mxu0 %v484
        %598 = vmatpush.bf16.msra.mxu0 %v482
        %599 = vmatpush.bf16.msra.mxu0 %v480
        %600 = vmatpush.bf16.msra.mxu0 %v478
        %601 = vmatmul.bf16.gmra.mxu0 %v526
        %v602 = vpop.f32.mrf.mxu0
        %v603 = vadd.f32 %v590, %v602
        %v604 = vpop.f32.mrf.mxu0
        %605 = vdwg.mxu0
        %v606 = vmax.f32 %v564, 0.0
        %v607 = vmax.f32 %v603, 0.0
        %v608 = vpack.c.bf16 %v606, %v606
        %v609 = vpack.c.bf16 %v607, %v607
        %v610 = vld [vmem:[%s3] sm:$0xf]
        %v611 = vld [vmem:[%s3 + $0x4] sm:$0xf]
        %v612 = vld [vmem:[%s3 + $0x8] sm:$0xf]
        %v613 = vld [vmem:[%s3 + $0xc] sm:$0xf]
        %v614 = vld [vmem:[%s3 + $0x10] sm:$0xf]
        %v615 = vld [vmem:[%s3 + $0x14] sm:$0xf]
        %v616 = vld [vmem:[%s3 + $0x18] sm:$0xf]
        %v617 = vld [vmem:[%s3 + $0x1c] sm:$0xf]
        %v618 = vld [vmem:[%s3 + $0x20] sm:$0xf]
        %v619 = vld [vmem:[%s3 + $0x24] sm:$0xf]
        %v620 = vld [vmem:[%s3 + $0x28] sm:$0xf]
        %v621 = vld [vmem:[%s3 + $0x2c] sm:$0xf]
        %v622 = vld [vmem:[%s3 + $0x30] sm:$0xf]
        %v623 = vld [vmem:[%s3 + $0x34] sm:$0xf]
        %v624 = vld [vmem:[%s3 + $0x38] sm:$0xf]
        %v625 = vld [vmem:[%s3 + $0x3c] sm:$0xf]
        %v626 = vld [vmem:[%s3 + $0x40] sm:$0xf]
        %v627 = vld [vmem:[%s3 + $0x44] sm:$0xf]
        %v628 = vld [vmem:[%s3 + $0x48] sm:$0xf]
        %v629 = vld [vmem:[%s3 + $0x4c] sm:$0xf]
        %v630 = vld [vmem:[%s3 + $0x50] sm:$0xf]
        %v631 = vld [vmem:[%s3 + $0x54] sm:$0xf]
        %v632 = vld [vmem:[%s3 + $0x58] sm:$0xf]
        %v633 = vld [vmem:[%s3 + $0x5c] sm:$0xf]
        %v634 = vld [vmem:[%s3 + $0x60] sm:$0xf]
        %v635 = vld [vmem:[%s3 + $0x64] sm:$0xf]
        %v636 = vld [vmem:[%s3 + $0x68] sm:$0xf]
        %v637 = vld [vmem:[%s3 + $0x6c] sm:$0xf]
        %v638 = vld [vmem:[%s3 + $0x70] sm:$0xf]
        %v639 = vld [vmem:[%s3 + $0x74] sm:$0xf]
        %v640 = vld [vmem:[%s3 + $0x78] sm:$0xf]
        %v641 = vld [vmem:[%s3 + $0x7c] sm:$0xf]
        %v642 = vld [vmem:[%s4] sm:$0x1]
        %v644 = vperm.slane %v642, 0
        %v678 = vunpack.c.l.b16 %v610
        %v679 = vunpack.c.l.b16 %v611
        %v680 = vunpack.c.l.b16 %v612
        %v681 = vunpack.c.l.b16 %v613
        %v682 = vunpack.c.l.b16 %v614
        %v683 = vunpack.c.l.b16 %v615
        %v684 = vunpack.c.l.b16 %v616
        %v685 = vunpack.c.l.b16 %v617
        %v686 = vunpack.c.l.b16 %v618
        %v687 = vunpack.c.l.b16 %v619
        %v688 = vunpack.c.l.b16 %v620
        %v689 = vunpack.c.l.b16 %v621
        %v690 = vunpack.c.l.b16 %v622
        %v691 = vunpack.c.l.b16 %v623
        %v692 = vunpack.c.l.b16 %v624
        %v693 = vunpack.c.l.b16 %v625
        %v694 = vunpack.c.l.b16 %v626
        %v695 = vunpack.c.l.b16 %v627
        %v696 = vunpack.c.l.b16 %v628
        %v697 = vunpack.c.l.b16 %v629
        %v698 = vunpack.c.l.b16 %v630
        %v699 = vunpack.c.l.b16 %v631
        %v700 = vunpack.c.l.b16 %v632
        %v701 = vunpack.c.l.b16 %v633
        %v702 = vunpack.c.l.b16 %v634
        %v703 = vunpack.c.l.b16 %v635
        %v704 = vunpack.c.l.b16 %v636
        %v705 = vunpack.c.l.b16 %v637
        %v706 = vunpack.c.l.b16 %v638
        %v707 = vunpack.c.l.b16 %v639
        %v708 = vunpack.c.l.b16 %v640
        %v709 = vunpack.c.l.b16 %v641
        %v710 = vpack.c.b16 %v679, %v678
        %v711 = vpack.c.b16 %v681, %v680
        %v712 = vpack.c.b16 %v683, %v682
        %v713 = vpack.c.b16 %v685, %v684
        %v714 = vpack.c.b16 %v687, %v686
        %v715 = vpack.c.b16 %v689, %v688
        %v716 = vpack.c.b16 %v691, %v690
        %v717 = vpack.c.b16 %v693, %v692
        %v718 = vpack.c.b16 %v695, %v694
        %v719 = vpack.c.b16 %v697, %v696
        %v720 = vpack.c.b16 %v699, %v698
        %v721 = vpack.c.b16 %v701, %v700
        %v722 = vpack.c.b16 %v703, %v702
        %v723 = vpack.c.b16 %v705, %v704
        %v724 = vpack.c.b16 %v707, %v706
        %v725 = vpack.c.b16 %v709, %v708
        %742 = vmatpush.bf16.msra.mxu0 %v717
        %743 = vmatpush.bf16.msra.mxu0 %v716
        %744 = vmatpush.bf16.msra.mxu0 %v715
        %745 = vmatpush.bf16.msra.mxu0 %v714
        %746 = vmatpush.bf16.msra.mxu0 %v713
        %747 = vmatpush.bf16.msra.mxu0 %v712
        %748 = vmatpush.bf16.msra.mxu0 %v711
        %749 = vmatpush.bf16.msra.mxu0 %v710
        %750 = vmatmul.bf16.gmra.mxu0 %v608
        %v751 = vpop.f32.mrf.mxu0
        %v752 = vadd.f32 %v644, %v751
        %v753 = vpop.f32.mrf.mxu0
        %754 = vdwg.mxu0
        %755 = vmatpush.bf16.msra.mxu0 %v725
        %756 = vmatpush.bf16.msra.mxu0 %v724
        %757 = vmatpush.bf16.msra.mxu0 %v723
        %758 = vmatpush.bf16.msra.mxu0 %v722
        %759 = vmatpush.bf16.msra.mxu0 %v721
        %760 = vmatpush.bf16.msra.mxu0 %v720
        %761 = vmatpush.bf16.msra.mxu0 %v719
        %762 = vmatpush.bf16.msra.mxu0 %v718
        %763 = vmatmul.bf16.gmra.mxu0 %v609
        %v764 = vpop.f32.mrf.mxu0
        %v765 = vadd.f32 %v752, %v764
        %v766 = vpop.f32.mrf.mxu0
        %767 = vdwg.mxu0
        %v768 = vmax.f32 %v765, 0.0
        %769 = vst.msk [vmem:[%s234] sm:$0xff] %vm273, %v768
        %s770 = sand.u32 %s138, 1
        %s771 = scalar_lea.sflag [#allocation4], %s770
        %s772 = sand.u32 %s138, 1
        %s773 = smul.addr %s772, 8
        %s774 = scalar_lea.vmem [#allocation5], %s773
        // Predicated region
        $region45: #{tpu_custom_call.1} parent=39 // pred_check
          %p775 = pneg %p148
        $region46: #{tpu_custom_call.1} parent=39 // pred_check_branch
          %777 = sbr.rel (%p775) target = $region48
        $region47: #{tpu_custom_call.1} parent=39 // pred_region
          %779 = vsyncadd %s771, 0
          %s780 = smul.addr %s20, 8
          %s781 = scalar_lea.hbm %s5, %s780
          %s783 = sshll.u32 %s774, 4
          %s784 = int_to_ptr.vmem [resolvable:$true] %s783
          %s785 = sshll.u32 %s781, 4
          %s786 = int_to_ptr.hbm [resolvable:$true] %s785
          %788 = dma.vmem_to_hbm [thread:$0]  %s784, 128, %s786, %s771
        $region48: #{tpu_custom_call.1} parent=39 // pred_fallthru
          _
      $region40: #{tpu_custom_call.1} parent=5 // pred_fallthru
        _
      %p789 = scmp.le.s32.totalorder 2, %s15
      // Predicated region
      $region49: #{tpu_custom_call.1} parent=5 // pred_check
        %p790 = pneg %p789
      $region50: #{tpu_custom_call.1} parent=5 // pred_check_branch
        %792 = sbr.rel (%p790) target = $region52
      $region51: #{tpu_custom_call.1} parent=5 // pred_region
        %s793 = ssub.s32 %s15, 2
        // Predicated region
        $region53: #{tpu_custom_call.1} parent=51 // pred_check
          %p794 = pneg %p154
        $region54: #{tpu_custom_call.1} parent=51 // pred_check_branch
          %796 = sbr.rel (%p794) target = $region56
        $region55: #{tpu_custom_call.1} parent=51 // pred_region
          %s797 = sand.u32 %s139, 1
          %s798 = scalar_lea.sflag [#allocation4], %s797
          %s799 = sand.u32 %s139, 1
          %s800 = smul.addr %s799, 8
          %s801 = scalar_lea.vmem [#allocation5], %s800
          %803 = dma.done %s798, 128
        $region56: #{tpu_custom_call.1} parent=51 // pred_fallthru
          _
      $region52: #{tpu_custom_call.1} parent=5 // pred_fallthru
        _
    $region6: #{tpu_custom_call.1} parent=1 // loop_footer
      %s19 = sadd.s32 1, %s15
    $region7: #{tpu_custom_call.1} parent=1 // loop_footer_branch
      %14 = sbr.rel target = $region3
    $region8: #{tpu_custom_call.1} parent=1 // loop_exit
      _
    %804 = vsyncpa [#allocation3], 1
    %s805 = scalar_lea.sflag [#allocation3], 1
    %806 = vsyncpa %s805, 1
    %807 = vsyncpa [#allocation4], 1
    %s808 = scalar_lea.sflag [#allocation4], 1
    %809 = vsyncpa %s808, 1

</llo_original>
